<compile_context>
chip_gen: v7x
topology: tpu7x:2x2x1
jax: 0.10.0
libtpu: 0.0.40
codegen_flags: <defaults>
</compile_context>

<pallas_src>
import jax
import jax.numpy as jnp
from jax import lax
from jax.experimental import pallas as pl
from jax.experimental.pallas import tpu as pltpu

IGNORE_INDEX = -100  # torch.nn.CrossEntropyLoss default


def _round_up(x, m):
    return (x + m - 1) // m * m


def _ce_partial_kernel(logits_ref, labels_ref, sum_ref, cnt_ref):
    """Per-block partial cross-entropy: writes (partial NLL sum, valid count)."""
    x = logits_ref[...].astype(jnp.float32)          # (tm, V), upcast in VMEM only
    lab = labels_ref[...]                            # (tm, 1) int32

    # stable log-softmax denominator
    m = jnp.max(x, axis=-1, keepdims=True)
    lse = m + jnp.log(jnp.sum(jnp.exp(x - m), axis=-1, keepdims=True))   # (tm, 1)

    # gather logit at the label index via one-hot lane select (no dynamic gather)
    col = lax.broadcasted_iota(jnp.int32, x.shape, 1)                    # (tm, V)
    picked = jnp.sum(jnp.where(col == lab, x, 0.0), axis=-1, keepdims=True)

    # ignore_index masking; also masks garbage rows of a ragged last tile
    # (lane-select, so Inf/NaN in those rows cannot leak into the result).
    valid = lab != IGNORE_INDEX
    loss_rows = jnp.where(valid, lse - picked, 0.0)                      # (tm, 1)

    psum = jnp.sum(loss_rows).reshape(1, 1, 1)
    pcnt = jnp.sum(valid.astype(jnp.float32)).reshape(1, 1, 1)

    # Lane-dense (1, 8, 128) unmasked stores; each grid block owns its own tile,
    # which keeps the grid axis legal as "parallel" (megacore on v7x).
    sum_ref[...] = jnp.broadcast_to(psum, sum_ref.shape)
    cnt_ref[...] = jnp.broadcast_to(pcnt, cnt_ref.shape)


def opt_loss(logits_tuple, labels, *, tm=None):
    """Pallas implementation of OPTLoss.forward.

    logits_tuple: tuple/list whose first element is logits [..., S, V]
    labels:       [..., S] integer labels
    """
    logits = logits_tuple[0]
    *lead, S, V = logits.shape

    # --- causal shift on the (tiny) labels only; logits are NOT copied -------
    labels_i32 = labels.astype(jnp.int32)
    shift_labels = jnp.concatenate(
        [labels_i32[..., 1:],
         jnp.full(tuple(lead) + (1,), IGNORE_INDEX, dtype=jnp.int32)],
        axis=-1)

    flat_logits = logits.reshape(-1, V)      # free reshape, native dtype (bf16 stays bf16)
    flat_labels = shift_labels.reshape(-1)
    N = flat_logits.shape[0]

    itemsize = jnp.dtype(flat_logits.dtype).itemsize
    pack = max(8, 32 // itemsize)            # sublane packing: 8 f32, 16 bf16, 32 int8
    V_pad = _round_up(V, 128)                # lane-padded vocab width in VMEM

    # --- tile-height selection sized for the generation's VMEM ---------------
    try:
        vmem_cap = int(pltpu.get_tpu_info().vmem_capacity_bytes)
    except Exception:
        vmem_cap = 64 * 1024 * 1024          # conservative (v7x) fallback
    if tm is None:
        # per-buffer budget: quarter of VMEM, capped (v7x: 16 MiB -> tm~160 bf16;
        # v5e/v6e: 24 MiB -> tm~240 bf16 at V=50k)
        budget = min(vmem_cap // 4, 24 * 1024 * 1024)
        tm = (budget // (V_pad * itemsize)) // pack * pack
        tm = min(max(tm, pack), 512)
    tm = max(pack, _round_up(tm, pack))
    tm = min(tm, _round_up(N, pack))         # don't exceed the data

    grid = pl.cdiv(N, tm)
    Np = grid * tm

    # Pad ONLY the labels; ragged tail rows of logits are masked via IGNORE.
    if Np != N:
        flat_labels = jnp.pad(flat_labels, (0, Np - N),
                              constant_values=IGNORE_INDEX)
    flat_labels = flat_labels.reshape(Np, 1)

    vmem_needed = (2 * tm * V_pad * itemsize     # double-buffered logits tiles
                   + 2 * tm * 512                # double-buffered label tiles (sublane-padded)
                   + 4 * 8 * 128 * 4             # double-buffered partial outputs
                   + (2 << 20))                  # slack
    vmem_cap_limit = max(32 << 20, vmem_cap * 7 // 8)
    vmem_limit = int(min(max(vmem_needed, 32 << 20), vmem_cap_limit))

    part_sum, part_cnt = pl.pallas_call(
        _ce_partial_kernel,
        out_shape=(jax.ShapeDtypeStruct((grid, 8, 128), jnp.float32),
                   jax.ShapeDtypeStruct((grid, 8, 128), jnp.float32)),
        grid_spec=pltpu.PrefetchScalarGridSpec(
            num_scalar_prefetch=0,
            grid=(grid,),
            in_specs=[
                pl.BlockSpec((tm, V), lambda i: (i, 0)),   # logits row-tile, full vocab
                pl.BlockSpec((tm, 1), lambda i: (i, 0)),   # matching labels column
            ],
            out_specs=(
                pl.BlockSpec((1, 8, 128), lambda i: (i, 0, 0)),   # per-block loss sum
                pl.BlockSpec((1, 8, 128), lambda i: (i, 0, 0)),   # per-block valid count
            ),
        ),
        compiler_params=pltpu.CompilerParams(
            dimension_semantics=("parallel",),   # independent blocks -> megacore OK
            vmem_limit_bytes=vmem_limit),
    )(flat_logits, flat_labels)

    total = jnp.sum(part_sum[:, 0, 0])
    count = jnp.sum(part_cnt[:, 0, 0])
    # Note: if every label is IGNORE_INDEX, count == 0 and this yields NaN,
    # matching torch.nn.CrossEntropyLoss behavior.
    return total / count


def _reference_loss(logits_tuple, labels):
    """Pure-JAX reference matching torch CrossEntropyLoss(mean, ignore_index=-100)."""
    logits = logits_tuple[0]
    V = logits.shape[-1]
    x = logits[..., :-1, :].reshape(-1, V).astype(jnp.float32)
    y = labels[..., 1:].reshape(-1).astype(jnp.int32)
    lse = jax.nn.logsumexp(x, axis=-1)
    picked = jnp.take_along_axis(x, jnp.clip(y, 0, V - 1)[:, None], axis=-1)[:, 0]
    valid = y != IGNORE_INDEX
    per = jnp.where(valid, lse - picked, 0.0)
    return jnp.sum(per) / jnp.sum(valid.astype(jnp.float32))


if __name__ == "__main__":
    key = jax.random.PRNGKey(0)
    k1, k2 = jax.random.split(key)

    B, S, V = 2, 8, 128
    logits_f32 = jax.random.normal(k1, (B, S, V), dtype=jnp.float32)
    labels = jax.random.randint(k2, (B, S), 0, V, dtype=jnp.int32)
    labels = labels.at[0, 3].set(IGNORE_INDEX)   # exercise ignore_index masking

    # f32 path
    loss = jax.block_until_ready(opt_loss((logits_f32,), labels))
    ref = jax.block_until_ready(_reference_loss((logits_f32,), labels))
    assert jnp.allclose(loss, ref, rtol=1e-5, atol=1e-5), (loss, ref)

    # native-bf16 streaming path (upcast happens inside the kernel only)
    logits_bf16 = logits_f32.astype(jnp.bfloat16)
    loss_bf = jax.block_until_ready(opt_loss((logits_bf16,), labels))
    ref_bf = jax.block_until_ready(_reference_loss((logits_bf16,), labels))
    assert jnp.allclose(loss_bf, ref_bf, rtol=1e-4, atol=1e-4), (loss_bf, ref_bf)

    print("KERNEL_OK")
</pallas_src>

<mosaic_0001>
module attributes {stable_mosaic.version = 11 : i64} {
  func.func @_ce_partial_kernel(%arg0: i32, %arg1: memref<16x128xf32, #tpu.memory_space<vmem>>, %arg2: memref<16x1xi32, #tpu.memory_space<vmem>>, %arg3: memref<1x8x128xf32, #tpu.memory_space<vmem>>, %arg4: memref<1x8x128xf32, #tpu.memory_space<vmem>>) attributes {dimension_semantics = [#tpu.dimension_semantics<parallel>], iteration_bounds = array<i64: 1>, scalar_prefetch = 0 : i64, scratch_operands = 0 : i64, tpu.core_type = #tpu.core_type<tc>, window_params = [{transform_indices = @transform_0, window_bounds = array<i64: 16, 128>}, {transform_indices = @transform_1, window_bounds = array<i64: 16, 1>}, {transform_indices = @transform_2, window_bounds = array<i64: 1, 8, 128>}, {transform_indices = @transform_3, window_bounds = array<i64: 1, 8, 128>}]} {
    %c0 = arith.constant 0 : index
    %c0_0 = arith.constant 0 : index
    %0 = vector.load %arg1[%c0, %c0_0] : memref<16x128xf32, #tpu.memory_space<vmem>>, vector<16x128xf32>
    %c0_1 = arith.constant 0 : index
    %c0_2 = arith.constant 0 : index
    %1 = vector.load %arg2[%c0_1, %c0_2] : memref<16x1xi32, #tpu.memory_space<vmem>>, vector<16x1xi32>
    %cst = arith.constant dense<0xFF800000> : vector<16xf32>
    %2 = vector.multi_reduction <maximumf>, %0, %cst [1] : vector<16x128xf32> to vector<16xf32>
    %3 = vector.shape_cast %2 : vector<16xf32> to vector<16x1xf32>
    %4 = vector.broadcast %3 : vector<16x1xf32> to vector<16x128xf32>
    %5 = arith.subf %0, %4 : vector<16x128xf32>
    %6 = math.exp %5 : vector<16x128xf32>
    %cst_3 = arith.constant dense<0.000000e+00> : vector<16xf32>
    %7 = vector.multi_reduction <add>, %6, %cst_3 [1] : vector<16x128xf32> to vector<16xf32>
    %8 = vector.shape_cast %7 : vector<16xf32> to vector<16x1xf32>
    %9 = math.log %8 : vector<16x1xf32>
    %10 = arith.addf %3, %9 : vector<16x1xf32>
    %11 = tpu.iota {dimensions = array<i32: 1>} : vector<16x128xi32>
    %12 = vector.broadcast %1 : vector<16x1xi32> to vector<16x128xi32>
    %13 = arith.cmpi eq, %11, %12 : vector<16x128xi32>
    %cst_4 = arith.constant 0.000000e+00 : f32
    %14 = vector.broadcast %cst_4 : f32 to vector<16x128xf32>
    %15 = arith.select %13, %0, %14 : vector<16x128xi1>, vector<16x128xf32>
    %cst_5 = arith.constant dense<0.000000e+00> : vector<16xf32>
    %16 = vector.multi_reduction <add>, %15, %cst_5 [1] : vector<16x128xf32> to vector<16xf32>
    %17 = vector.shape_cast %16 : vector<16xf32> to vector<16x1xf32>
    %c-100_i32 = arith.constant -100 : i32
    %18 = vector.broadcast %c-100_i32 : i32 to vector<16x1xi32>
    %19 = arith.cmpi ne, %1, %18 : vector<16x1xi32>
    %20 = arith.subf %10, %17 : vector<16x1xf32>
    %cst_6 = arith.constant 0.000000e+00 : f32
    %21 = vector.broadcast %cst_6 : f32 to vector<16x1xf32>
    %22 = arith.select %19, %20, %21 : vector<16x1xi1>, vector<16x1xf32>
    %23 = vector.shape_cast %22 : vector<16x1xf32> to vector<1x16x1xf32>
    %cst_7 = arith.constant dense<0.000000e+00> : vector<1xf32>
    %24 = vector.multi_reduction <add>, %23, %cst_7 [1, 2] : vector<1x16x1xf32> to vector<1xf32>
    %25 = vector.shape_cast %24 : vector<1xf32> to vector<1x1x1xf32>
    %26 = vector.extract %25[0, 0, 0] : f32 from vector<1x1x1xf32>
    %27 = vector.broadcast %26 : f32 to vector<1x1x1xf32>
    %28 = arith.extui %19 : vector<16x1xi1> to vector<16x1xi32>
    %29 = arith.sitofp %28 : vector<16x1xi32> to vector<16x1xf32>
    %30 = vector.shape_cast %29 : vector<16x1xf32> to vector<1x16x1xf32>
    %cst_8 = arith.constant dense<0.000000e+00> : vector<1xf32>
    %31 = vector.multi_reduction <add>, %30, %cst_8 [1, 2] : vector<1x16x1xf32> to vector<1xf32>
    %32 = vector.shape_cast %31 : vector<1xf32> to vector<1x1x1xf32>
    %33 = vector.extract %32[0, 0, 0] : f32 from vector<1x1x1xf32>
    %34 = vector.broadcast %33 : f32 to vector<1x1x1xf32>
    %35 = vector.shape_cast %27 : vector<1x1x1xf32> to vector<1x1x1xf32>
    %36 = vector.broadcast %35 : vector<1x1x1xf32> to vector<1x8x128xf32>
    %c0_9 = arith.constant 0 : index
    %c0_10 = arith.constant 0 : index
    %c0_11 = arith.constant 0 : index
    %37 = vector.load %arg3[%c0_9, %c0_10, %c0_11] : memref<1x8x128xf32, #tpu.memory_space<vmem>>, vector<1x8x128xf32>
    tpu.vector_store %arg3[%c0_9, %c0_10, %c0_11], %36 {strides = array<i32>} : memref<1x8x128xf32, #tpu.memory_space<vmem>>, vector<1x8x128xf32>,
    %38 = vector.shape_cast %34 : vector<1x1x1xf32> to vector<1x1x1xf32>
    %39 = vector.broadcast %38 : vector<1x1x1xf32> to vector<1x8x128xf32>
    %c0_12 = arith.constant 0 : index
    %c0_13 = arith.constant 0 : index
    %c0_14 = arith.constant 0 : index
    %40 = vector.load %arg4[%c0_12, %c0_13, %c0_14] : memref<1x8x128xf32, #tpu.memory_space<vmem>>, vector<1x8x128xf32>
    tpu.vector_store %arg4[%c0_12, %c0_13, %c0_14], %39 {strides = array<i32>} : memref<1x8x128xf32, #tpu.memory_space<vmem>>, vector<1x8x128xf32>,
    return
  }
  func.func @transform_0(%arg0: i32) -> (i32, i32) {
    %c0_i32 = arith.constant 0 : i32
    %c0_i32_0 = arith.constant 0 : i32
    return %arg0, %c0_i32 : i32, i32
  }
  func.func @transform_1(%arg0: i32) -> (i32, i32) {
    %c0_i32 = arith.constant 0 : i32
    %c0_i32_0 = arith.constant 0 : i32
    return %arg0, %c0_i32 : i32, i32
  }
  func.func @transform_2(%arg0: i32) -> (i32, i32, i32) {
    %c0_i32 = arith.constant 0 : i32
    %c0_i32_0 = arith.constant 0 : i32
    %c0_i32_1 = arith.constant 0 : i32
    return %arg0, %c0_i32, %c0_i32_0 : i32, i32, i32
  }
  func.func @transform_3(%arg0: i32) -> (i32, i32, i32) {
    %c0_i32 = arith.constant 0 : i32
    %c0_i32_0 = arith.constant 0 : i32
    %c0_i32_1 = arith.constant 0 : i32
    return %arg0, %c0_i32, %c0_i32_0 : i32, i32, i32
  }
}

</mosaic_0001>

<llo_original>
// kernel: tpu_custom_call.1
$region0: #{tpu_custom_call.1}
  #allocation0 [shape = 'u32[]', space=smem, size = 0x4, offset = 0x4, fixed_abs, tag = 'smem constant byte address 0x4 - core index']
  #allocation1 [shape = 'u32[144,128]{1,0:T(1,128)}', space=vmem, size = 0x12000, scoped, tag = 'internal scratch']
  %s0 = inlined_call_operand.vmem [shape: f32[16,128], index: 0, kind: input, shape index: {}]
  %s1 = inlined_call_operand.vmem [shape: s32[16,1], index: 1, kind: input, shape index: {}]
  %s2 = inlined_call_operand.hbm [shape: f32[1,8,128], index: 2, kind: output, shape index: {0}]
  %s3 = inlined_call_operand.hbm [shape: f32[1,8,128], index: 3, kind: output, shape index: {1}]
  %4 = xla_tuple %s2, %s3
  %s5 = sld [smem:[#allocation0]]
  $region26: #{tpu_custom_call.1} parent=0
    _
  %s7 = ssub.s32 1, %s5
  %s8 = scalar_select 0, %s7, %s5
  $region1: #{tpu_custom_call.1} parent=0
    #allocation2 [shape = 'u8[4096]{0}', space=vmem, size = 0x1000, scoped, tag = 'output window, operand 0, single buffered']
    #allocation3 [shape = 's32[1]{0}', space=sflag, size = 0x4, scoped, tag = 'scoped memory for tpu_custom_call.1']
    #allocation4 [shape = 'u8[4096]{0}', space=vmem, size = 0x1000, scoped, tag = 'output window, operand 1, single buffered']
    #allocation5 [shape = 's32[1]{0}', space=sflag, size = 0x4, scoped, tag = 'scoped memory for tpu_custom_call.1']
    %9 = vsyncpa [#allocation3], 0
    %10 = vsyncpa [#allocation5], 0
    // Predicated region
    $region2: #{tpu_custom_call.1} parent=1 // pred_check
      _
    $region3: #{tpu_custom_call.1} parent=1 // pred_check_branch
      %12 = sbr.rel (0) target = $region5
    $region4: #{tpu_custom_call.1} parent=1 // pred_region
      _
    $region5: #{tpu_custom_call.1} parent=1 // pred_fallthru
      _
    // Predicated region
    $region6: #{tpu_custom_call.1} parent=1 // pred_check
      _
    $region7: #{tpu_custom_call.1} parent=1 // pred_check_branch
      %14 = sbr.rel (0) target = $region9
    $region8: #{tpu_custom_call.1} parent=1 // pred_region
      _
    $region9: #{tpu_custom_call.1} parent=1 // pred_fallthru
      _
    %v15 = vld [vmem:[%s0] sm:$0xff]
    %v16 = vld [vmem:[%s0 + $0x8] sm:$0xff]
    %v17 = vld [vmem:[%s1] sm:$0xff]
    %v18 = vld [vmem:[%s1 + $0x8] sm:$0xff]
    %19 = vmax.xlane.f32.xlu0 %v15
    %v20 = vpop.xlane.xlu0 %19
    %21 = vmax.xlane.f32.xlu0 %v16
    %v22 = vpop.xlane.xlu0 %21
    %v23 = vsub.f32 %v15, %v20
    %v24 = vsub.f32 %v16, %v22
    %v25 = vmul.f32 %v23, 1.442695
    %v26 = vpow.pop %v25
    %v27 = vmul.f32 %v24, 1.442695
    %v28 = vpow.pop %v27
    %29 = vadd.xlane.f32.xlu0 %v26
    %v30 = vpop.xlane.xlu0 %29
    %31 = vadd.xlane.f32.xlu0 %v28
    %v32 = vpop.xlane.xlu0 %31
    %v33 = vlog2.pop %v30
    %v34 = vmul.f32 %v33, 0.6931472
    %v35 = vlog2.pop %v32
    %v36 = vmul.f32 %v35, 0.6931472
    %v37 = vadd.f32 %v20, %v34
    %v38 = vadd.f32 %v22, %v36
    %v39 = vlaneseq
    %v40 = vand.u32 %v39, 127
    %41 = vset.pattern.permute.xlu0 0
    %42 = vperm.xlu0 %41, %v17
    %v43 = vpop.permute.xlu0 %42
    %44 = vset.pattern.permute.xlu0 0
    %45 = vperm.xlu0 %44, %v18
    %v46 = vpop.permute.xlu0 %45
    %vm47 = vcmp.eq.s32.totalorder %v40, %v43
    %vm48 = vcmp.eq.s32.totalorder %v40, %v46
    %v49 = vsel %vm47, %v15, 0.0
    %v50 = vsel %vm48, %v16, 0.0
    %51 = vadd.xlane.f32.xlu0 %v49
    %v52 = vpop.xlane.xlu0 %51
    %53 = vadd.xlane.f32.xlu0 %v50
    %v54 = vpop.xlane.xlu0 %53
    %vm55 = vcmp.ne.s32.totalorder %v17, 4294967196
    %vm56 = vcmp.ne.s32.totalorder %v18, 4294967196
    %v57 = vsub.f32 %v37, %v52
    %v58 = vsub.f32 %v38, %v54
    %v59 = vsel %vm55, %v57, 0.0
    %v60 = vsel %vm56, %v58, 0.0
    %vm61 = vcmask 7168
    %v62 = vsel %vm61, %v59, 0.0
    %v63 = vsel %vm61, %v60, 0.0
    %v64 = vadd.f32 %v62, %v63
    %65 = vadd.xlane.f32.xlu0 %v64
    %v66 = vpop.xlane.xlu0 %65
    %v67 = vrot.slane %v66, 4
    %v68 = vadd.f32 %v66, %v67
    %v69 = vrot.slane %v68, 2
    %v70 = vadd.f32 %v68, %v69
    %v71 = vrot.slane %v70, 1
    %v72 = vadd.f32 %v70, %v71
    %s73 = vtos %v72
    %v74 = vsel %vm55, 1, 0
    %v75 = vsel %vm56, 1, 0
    %v76 = vcvt.s32.f32 %v74
    %v77 = vcvt.s32.f32 %v75
    %v78 = vsel %vm61, %v76, 0.0
    %v79 = vsel %vm61, %v77, 0.0
    %v80 = vadd.f32 %v78, %v79
    %81 = vadd.xlane.f32.xlu0 %v80
    %v82 = vpop.xlane.xlu0 %81
    %v83 = vrot.slane %v82, 4
    %v84 = vadd.f32 %v82, %v83
    %v85 = vrot.slane %v84, 2
    %v86 = vadd.f32 %v84, %v85
    %v87 = vrot.slane %v86, 1
    %v88 = vadd.f32 %v86, %v87
    %s89 = vtos %v88
    %v90 = vstv %s73
    %91 = vst [vmem:[#allocation2] sm:$0xff] %v90
    %v92 = vstv %s89
    %93 = vst [vmem:[#allocation4] sm:$0xff] %v92
    // Predicated region
    $region10: #{tpu_custom_call.1} parent=1 // pred_check
      _
    $region11: #{tpu_custom_call.1} parent=1 // pred_check_branch
      %95 = sbr.rel (0) target = $region13
    $region12: #{tpu_custom_call.1} parent=1 // pred_region
      %s97 = ssub.s32 128, 128
      %98 = vsyncadd [#allocation3], %s97
      %s100 = sshll.u32 [#allocation2], 4
      %s101 = int_to_ptr.vmem [resolvable:$true] %s100
      %103 = dma.vmem_to_hbm [thread:$0]  %s101, 128, %s2, [#allocation3]
    $region13: #{tpu_custom_call.1} parent=1 // pred_fallthru
      _
    // Predicated region
    $region14: #{tpu_custom_call.1} parent=1 // pred_check
      _
    $region15: #{tpu_custom_call.1} parent=1 // pred_check_branch
      %105 = sbr.rel (0) target = $region17
    $region16: #{tpu_custom_call.1} parent=1 // pred_region
      %s107 = ssub.s32 128, 128
      %108 = vsyncadd [#allocation5], %s107
      %s110 = sshll.u32 [#allocation4], 4
      %s111 = int_to_ptr.vmem [resolvable:$true] %s110
      %113 = dma.vmem_to_hbm [thread:$0]  %s111, 128, %s3, [#allocation5]
    $region17: #{tpu_custom_call.1} parent=1 // pred_fallthru
      _
    // Predicated region
    $region18: #{tpu_custom_call.1} parent=1 // pred_check
      _
    $region19: #{tpu_custom_call.1} parent=1 // pred_check_branch
      %115 = sbr.rel (0) target = $region21
    $region20: #{tpu_custom_call.1} parent=1 // pred_region
      %116 = dma.done [#allocation3], 128
    $region21: #{tpu_custom_call.1} parent=1 // pred_fallthru
      _
    // Predicated region
    $region22: #{tpu_custom_call.1} parent=1 // pred_check
      _
    $region23: #{tpu_custom_call.1} parent=1 // pred_check_branch
      %118 = sbr.rel (0) target = $region25
    $region24: #{tpu_custom_call.1} parent=1 // pred_region
      %119 = dma.done [#allocation5], 128
    $region25: #{tpu_custom_call.1} parent=1 // pred_fallthru
      _
    %120 = vsyncpa [#allocation3], 1
    %121 = vsyncpa [#allocation5], 1

</llo_original>
